<compile_context>
chip_gen: v6e
topology: v6e:2x2x1
jax: 0.10.0
libtpu: 0.0.40
codegen_flags: <defaults>
</compile_context>

<pallas_src>
import math

import jax
import jax.numpy as jnp
from jax.experimental import pallas as pl
from jax.experimental.pallas import tpu as pltpu


def _make_pe_table(d_model: int, max_len: int, dtype=jnp.float32) -> jnp.ndarray:
    """Deterministic sinusoidal table, identical to the PyTorch __init__."""
    position = jnp.arange(0, max_len, dtype=jnp.float32)[:, None]            # (max_len, 1)
    div_term = jnp.exp(
        jnp.arange(0, d_model, 2, dtype=jnp.float32) * (-math.log(10000.0) / d_model)
    )                                                                         # (d_model//2,)
    pe = jnp.zeros((max_len, d_model), dtype=jnp.float32)
    pe = pe.at[:, 0::2].set(jnp.sin(position * div_term))
    pe = pe.at[:, 1::2].set(jnp.cos(position * div_term))
    return pe.astype(dtype)                                                   # (max_len, d_model)


def _add_pe_3d_kernel(x_ref, pe_ref, o_ref):
    # x_ref/o_ref: (TS, B, D) tile; pe_ref: (TS, D) tile; broadcast over batch.
    o_ref[...] = x_ref[...] + pe_ref[...][:, None, :]


def _add_pe_2d_kernel(x_ref, pe_ref, o_ref):
    # Lane-dense slab path: both operands are (TS, B*D).
    o_ref[...] = x_ref[...] + pe_ref[...]


def _choose_seq_tile(S: int, row_bytes: int, target_bytes: int = 2 << 20) -> int:
    """Pick a sequence tile giving ~2 MiB x-blocks, multiple of 8 when tiled."""
    ts = max(1, target_bytes // max(row_bytes, 1))
    ts = min(int(ts), S)
    if ts < S:
        ts = max(8, (ts // 8) * 8)
        ts = min(ts, S)
    return ts


def _compiler_params(vmem_limit_bytes: int) -> pltpu.CompilerParams:
    # Every tile is independent (no accumulator) -> "parallel" lets v7x shard
    # the grid across its two TensorCores; free on v5e/v6e.
    return pltpu.CompilerParams(
        dimension_semantics=("parallel",),
        vmem_limit_bytes=vmem_limit_bytes,
    )


def positional_encoding(x: jnp.ndarray, pe_table: jnp.ndarray) -> jnp.ndarray:
    """x: (seq_len, batch, d_model); pe_table: (max_len, d_model)."""
    S, B, D = x.shape
    itemsize = jnp.dtype(x.dtype).itemsize
    # Glue: static slice (== pe[:x.size(0)]) + one-time cast to x.dtype.
    pe_slice = pe_table[:S, :].astype(x.dtype)

    row_bytes = B * D * itemsize
    ts = _choose_seq_tile(S, row_bytes)
    grid = (pl.cdiv(S, ts),)
    x_block_bytes = ts * B * D * itemsize

    if D % 128 == 0:
        # d_model is already lane-dense: keep (S, B, D) blocks, pe stays (TS, D)
        # so its HBM footprint is B x smaller than x.
        pe_block_bytes = ts * D * itemsize
        vmem_limit = min(
            max(4 * x_block_bytes + 2 * pe_block_bytes + (2 << 20), 16 << 20),
            32 << 20,
        )
        return pl.pallas_call(
            _add_pe_3d_kernel,
            out_shape=jax.ShapeDtypeStruct((S, B, D), x.dtype),
            grid_spec=pltpu.PrefetchScalarGridSpec(
                num_scalar_prefetch=0,
                grid=grid,
                in_specs=[
                    pl.BlockSpec((ts, B, D), lambda i: (i, 0, 0)),
                    pl.BlockSpec((ts, D), lambda i: (i, 0)),
                ],
                out_specs=pl.BlockSpec((ts, B, D), lambda i: (i, 0, 0)),
            ),
            compiler_params=_compiler_params(vmem_limit),
            input_output_aliases={0: 0},
        )(x, pe_slice)

    # Small d_model (< 128 lanes): present a lane-dense (S, B*D) slab so stores
    # are unmasked full-lane vst. Row-major reshape of x is free; pe is tiled
    # across batch once in the wrapper (small for these shapes).
    x2 = x.reshape(S, B * D)
    pe2 = jnp.tile(pe_slice, (1, B))  # (S, B*D), matches row-major (S, B, D) layout
    vmem_limit = min(max(6 * x_block_bytes + (2 << 20), 16 << 20), 32 << 20)
    out2 = pl.pallas_call(
        _add_pe_2d_kernel,
        out_shape=jax.ShapeDtypeStruct((S, B * D), x.dtype),
        grid_spec=pltpu.PrefetchScalarGridSpec(
            num_scalar_prefetch=0,
            grid=grid,
            in_specs=[
                pl.BlockSpec((ts, B * D), lambda i: (i, 0)),
                pl.BlockSpec((ts, B * D), lambda i: (i, 0)),
            ],
            out_specs=pl.BlockSpec((ts, B * D), lambda i: (i, 0)),
        ),
        compiler_params=_compiler_params(vmem_limit),
        input_output_aliases={0: 0},
    )(x2, pe2)
    return out2.reshape(S, B, D)


if __name__ == "__main__":
    key = jax.random.PRNGKey(0)
    ok = True

    # Case 1: module-like small shape (d_model=32 -> lane-dense slab path).
    d_model, max_len, seq_len, batch = 32, 64, 8, 2
    k1, k2 = jax.random.split(key)
    x = jax.random.normal(k1, (seq_len, batch, d_model), dtype=jnp.float32)
    pe_table = _make_pe_table(d_model, max_len)
    out = jax.block_until_ready(positional_encoding(x, pe_table))
    ref = x + pe_table[:seq_len][:, None, :]
    ok &= out.shape == x.shape and bool(jnp.allclose(out, ref, atol=1e-6))

    # Case 2: lane-dense d_model (multiple of 128 -> 3D blocked path).
    d_model2, seq_len2, batch2 = 128, 16, 2
    x2 = jax.random.normal(k2, (seq_len2, batch2, d_model2), dtype=jnp.float32)
    pe_table2 = _make_pe_table(d_model2, max_len)
    out2 = jax.block_until_ready(positional_encoding(x2, pe_table2))
    ref2 = x2 + pe_table2[:seq_len2][:, None, :]
    ok &= out2.shape == x2.shape and bool(jnp.allclose(out2, ref2, atol=1e-6))

    assert ok, "mismatch vs reference"
    print("KERNEL_OK")
</pallas_src>

<mosaic_0001>
module attributes {stable_mosaic.version = 11 : i64} {
  func.func @_add_pe_2d_kernel(%arg0: i32, %arg1: memref<8x64xf32, #tpu.memory_space<vmem>>, %arg2: memref<8x64xf32, #tpu.memory_space<vmem>>, %arg3: memref<8x64xf32, #tpu.memory_space<vmem>>) attributes {dimension_semantics = [#tpu.dimension_semantics<parallel>], iteration_bounds = array<i64: 1>, scalar_prefetch = 0 : i64, scratch_operands = 0 : i64, tpu.core_type = #tpu.core_type<tc>, window_params = [{transform_indices = @transform_0, window_bounds = array<i64: 8, 64>}, {transform_indices = @transform_1, window_bounds = array<i64: 8, 64>}, {transform_indices = @transform_2, window_bounds = array<i64: 8, 64>}]} {
    %c0 = arith.constant 0 : index
    %c0_0 = arith.constant 0 : index
    %0 = vector.load %arg1[%c0, %c0_0] : memref<8x64xf32, #tpu.memory_space<vmem>>, vector<8x64xf32>
    %c0_1 = arith.constant 0 : index
    %c0_2 = arith.constant 0 : index
    %1 = vector.load %arg2[%c0_1, %c0_2] : memref<8x64xf32, #tpu.memory_space<vmem>>, vector<8x64xf32>
    %2 = arith.addf %0, %1 : vector<8x64xf32>
    %c0_3 = arith.constant 0 : index
    %c0_4 = arith.constant 0 : index
    %3 = vector.load %arg3[%c0_3, %c0_4] : memref<8x64xf32, #tpu.memory_space<vmem>>, vector<8x64xf32>
    tpu.vector_store %arg3[%c0_3, %c0_4], %2 {strides = array<i32>} : memref<8x64xf32, #tpu.memory_space<vmem>>, vector<8x64xf32>,
    return
  }
  func.func @transform_0(%arg0: i32) -> (i32, i32) {
    %c0_i32 = arith.constant 0 : i32
    %c0_i32_0 = arith.constant 0 : i32
    return %arg0, %c0_i32 : i32, i32
  }
  func.func @transform_1(%arg0: i32) -> (i32, i32) {
    %c0_i32 = arith.constant 0 : i32
    %c0_i32_0 = arith.constant 0 : i32
    return %arg0, %c0_i32 : i32, i32
  }
  func.func @transform_2(%arg0: i32) -> (i32, i32) {
    %c0_i32 = arith.constant 0 : i32
    %c0_i32_0 = arith.constant 0 : i32
    return %arg0, %c0_i32 : i32, i32
  }
}

</mosaic_0001>

<llo_original>
// kernel: tpu_custom_call.1
$region0: #{tpu_custom_call.1}
  #allocation0 [shape = 'u32[]', space=smem, size = 0x4, offset = 0x4, fixed_abs, tag = 'smem constant byte address 0x4 - core index']
  #allocation1 [shape = 'u32[144,128]{1,0:T(1,128)}', space=vmem, size = 0x12000, scoped, tag = 'internal scratch']
  %s0 = inlined_call_operand.hbm [shape: f32[8,64], index: 0, kind: input, shape index: {}, may-alias: {0,2}]
  %s1 = inlined_call_operand.vmem [shape: f32[8,64], index: 1, kind: input, shape index: {}]
  %s2 = inlined_call_operand.hbm [shape: f32[8,64], index: 2, kind: output, shape index: {}, may-alias: {0,2}]
  %s3 = sld [smem:[#allocation0]]
  $region22: #{tpu_custom_call.1} parent=0
    _
  %s5 = ssub.s32 1, %s3
  %s6 = scalar_select 0, %s5, %s3
  $region1: #{tpu_custom_call.1} parent=0
    #allocation2 [shape = 'u8[4096]{0}', space=vmem, size = 0x1000, scoped, tag = 'input window, operand 0, single buffered']
    #allocation3 [shape = 's32[1]{0}', space=sflag, size = 0x4, scoped, tag = 'scoped memory for tpu_custom_call.1']
    #allocation4 [shape = 's32[1]{0}', space=sflag, size = 0x4, scoped, tag = 'scoped memory for tpu_custom_call.1']
    #allocation5 [shape = 'u8[4096]{0}', space=vmem, size = 0x1000, scoped, tag = 'output window, operand 0, single buffered']
    %7 = vsyncpa [#allocation3], 0
    %8 = vsyncpa [#allocation4], 0
    // Predicated region
    $region2: #{tpu_custom_call.1} parent=1 // pred_check
      _
    $region3: #{tpu_custom_call.1} parent=1 // pred_check_branch
      %10 = sbr.rel (0) target = $region5
    $region4: #{tpu_custom_call.1} parent=1 // pred_region
      %s12 = ssub.s32 128, 128
      %13 = vsyncadd [#allocation3], %s12
      %s15 = sshll.u32 [#allocation2], 4
      %s16 = int_to_ptr.vmem [resolvable:$true] %s15
      %18 = dma.hbm_to_vmem [thread:$0]  %s0, 128, %s16, [#allocation3]
    $region5: #{tpu_custom_call.1} parent=1 // pred_fallthru
      _
    // Predicated region
    $region6: #{tpu_custom_call.1} parent=1 // pred_check
      _
    $region7: #{tpu_custom_call.1} parent=1 // pred_check_branch
      %20 = sbr.rel (0) target = $region9
    $region8: #{tpu_custom_call.1} parent=1 // pred_region
      _
    $region9: #{tpu_custom_call.1} parent=1 // pred_fallthru
      _
    // Predicated region
    $region10: #{tpu_custom_call.1} parent=1 // pred_check
      _
    $region11: #{tpu_custom_call.1} parent=1 // pred_check_branch
      %22 = sbr.rel (0) target = $region13
    $region12: #{tpu_custom_call.1} parent=1 // pred_region
      %23 = dma.done [#allocation3], 128
    $region13: #{tpu_custom_call.1} parent=1 // pred_fallthru
      _
    %v24 = vld [vmem:[#allocation2] sm:$0xff]
    %v25 = vld [vmem:[%s1] sm:$0xff]
    %v26 = vadd.f32 %v24, %v25
    %vm27 = vcmask 523264
    %28 = vst.msk [vmem:[#allocation5] sm:$0xff] %vm27, %v26
    // Predicated region
    $region14: #{tpu_custom_call.1} parent=1 // pred_check
      _
    $region15: #{tpu_custom_call.1} parent=1 // pred_check_branch
      %30 = sbr.rel (0) target = $region17
    $region16: #{tpu_custom_call.1} parent=1 // pred_region
      %s32 = ssub.s32 128, 128
      %33 = vsyncadd [#allocation4], %s32
      %s35 = sshll.u32 [#allocation5], 4
      %s36 = int_to_ptr.vmem [resolvable:$true] %s35
      %38 = dma.vmem_to_hbm [thread:$0]  %s36, 128, %s2, [#allocation4]
    $region17: #{tpu_custom_call.1} parent=1 // pred_fallthru
      _
    // Predicated region
    $region18: #{tpu_custom_call.1} parent=1 // pred_check
      _
    $region19: #{tpu_custom_call.1} parent=1 // pred_check_branch
      %40 = sbr.rel (0) target = $region21
    $region20: #{tpu_custom_call.1} parent=1 // pred_region
      %41 = dma.done [#allocation4], 128
    $region21: #{tpu_custom_call.1} parent=1 // pred_fallthru
      _
    %42 = vsyncpa [#allocation3], 1
    %43 = vsyncpa [#allocation4], 1

</llo_original>
